<compile_context>
chip_gen: v6e
topology: v6e:2x2x1
jax: 0.10.0
libtpu: 0.0.40
codegen_flags: <defaults>
</compile_context>

<pallas_src>
import jax
import jax.numpy as jnp
from jax.experimental import pallas as pl
from jax.experimental.pallas import tpu as pltpu


def _round_up(x, m):
    return ((x + m - 1) // m) * m


def _baseline_dnn_kernel(sum_ref, len_ref, w1_ref, b1_ref, w2_ref, b2_ref, out_ref):
    # sum_ref : (BT, DIM_PAD)      bf16  sum of word embeddings per sample
    # len_ref : (BT, 1)            f32   sequence lengths (padded rows = 1.0)
    # w1_ref  : (DIM_PAD, LATENT)  bf16, b1_ref: (1, LATENT)   f32
    # w2_ref  : (LATENT, OUT_PAD)  bf16, b2_ref: (1, OUT_PAD)  f32
    # out_ref : (BT, OUT_PAD)      bf16  (lane-dense padded logits)
    inv_len = pl.reciprocal(len_ref[...], approx=True)            # EUP, not VALU
    rep = (sum_ref[...].astype(jnp.float32) * inv_len).astype(jnp.bfloat16)  # mean pool

    # lin1 + ReLU (bf16 MXU operands, f32 accumulation)
    h = jnp.dot(rep, w1_ref[...], preferred_element_type=jnp.float32) + b1_ref[...]
    h = jnp.maximum(h, 0.0)

    # TODO(synk): nn.Dropout(p=0.3) is identity in eval mode.

    # lin2 -> logits (lane-dense padded bf16 writeback)
    out_ref[...] = (
        jnp.dot(h.astype(jnp.bfloat16), w2_ref[...], preferred_element_type=jnp.float32)
        + b2_ref[...]
    ).astype(out_ref.dtype)


def baseline_dnn_forward(x_ids, lengths, emb_table, w1, b1, w2, b2, *, b_tile=512):
    """x_ids: (B, SEQ) int32, lengths: (B,) float32.  Returns (B, OUT) f32 logits."""
    B, SEQ = x_ids.shape
    V, DIM = emb_table.shape
    LATENT = w1.shape[1]
    OUT = w2.shape[1]

    # --- glue (plain JAX): embedding gather + sum pooling --------------------
    # bf16 table halves the dominant gather HBM stream; accumulate in f32,
    # stream the (B, DIM) result to the kernel as bf16.
    emb_bf = emb_table.astype(jnp.bfloat16)
    emb_sum = jnp.sum(
        jnp.take(emb_bf, x_ids, axis=0).astype(jnp.float32), axis=1
    ).astype(jnp.bfloat16)  # (B, DIM) bf16

    # --- TPU-friendly padding / tiling ---------------------------------------
    B8 = _round_up(B, 8)                      # pad batch only to the sublane quantum
    n_tiles = -(-B8 // max(8, b_tile))        # ceil-div by requested tile
    if n_tiles < 2 and B8 >= 16:
        n_tiles = 2                           # v7x: >=2 tiles so both TCs get work
    bt = _round_up(-(-B8 // n_tiles), 8)      # actual tile; waste <= 8*n_tiles rows
    B_pad = n_tiles * bt

    DIM_PAD = _round_up(DIM, 128)             # lane-dense input / full MXU K-feed
    OUT_PAD = _round_up(OUT, 128)              # lane-dense output -> unmasked vst

    emb_sum = jnp.pad(emb_sum, ((0, B_pad - B), (0, DIM_PAD - DIM)))
    lens2d = jnp.pad(
        lengths.astype(jnp.float32), (0, B_pad - B), constant_values=1.0
    ).reshape(B_pad, 1)

    w1_bf = jnp.pad(w1, ((0, DIM_PAD - DIM), (0, 0))).astype(jnp.bfloat16)
    w2_bf = jnp.pad(w2, ((0, 0), (0, OUT_PAD - OUT))).astype(jnp.bfloat16)
    b1_2d = b1.reshape(1, LATENT).astype(jnp.float32)
    b2_2d = jnp.pad(b2, (0, OUT_PAD - OUT)).reshape(1, OUT_PAD).astype(jnp.float32)

    # Per-step VMEM (bt=512, DIM_PAD=128, LATENT=1024, OUT_PAD=128):
    #   inputs  2*bt*DIM_PAD*2 + 2*bt*4          ~ 0.26 MiB (double-buffered bf16)
    #   weights DIM_PAD*LATENT*2 + LATENT*OUT_PAD*2 + biases  ~ 0.5 MiB (resident)
    #   h       bt*LATENT*(4+2)                  ~ 3 MiB (f32 + bf16 copy)
    #   outputs 2*bt*OUT_PAD*2                   ~ 0.25 MiB
    # ~4 MiB total; explicit limit below keeps larger bt/DIM safe on v5e's
    # 16 MiB scoped-VMEM default and within v7x's 64 MiB physical VMEM.
    grid = (n_tiles,)
    out = pl.pallas_call(
        _baseline_dnn_kernel,
        out_shape=jax.ShapeDtypeStruct((B_pad, OUT_PAD), jnp.bfloat16),
        grid_spec=pltpu.PrefetchScalarGridSpec(
            num_scalar_prefetch=0,
            grid=grid,
            in_specs=[
                pl.BlockSpec((bt, DIM_PAD), lambda i: (i, 0)),
                pl.BlockSpec((bt, 1), lambda i: (i, 0)),
                pl.BlockSpec((DIM_PAD, LATENT), lambda i: (0, 0)),   # resident
                pl.BlockSpec((1, LATENT), lambda i: (0, 0)),         # resident
                pl.BlockSpec((LATENT, OUT_PAD), lambda i: (0, 0)),   # resident
                pl.BlockSpec((1, OUT_PAD), lambda i: (0, 0)),        # resident
            ],
            out_specs=pl.BlockSpec((bt, OUT_PAD), lambda i: (i, 0)),
        ),
        compiler_params=pltpu.CompilerParams(
            dimension_semantics=("parallel",),   # v7x: shard batch tiles over 2 TCs
            vmem_limit_bytes=48 * 1024 * 1024,
        ),
    )(emb_sum, lens2d, w1_bf, b1_2d, w2_bf, b2_2d)

    return out[:B, :OUT].astype(jnp.float32)


def _reference_forward(x_ids, lengths, emb_table, w1, b1, w2, b2):
    """Same math as the kernel path (bf16 gather/streams, f32 accumulation)."""
    emb = jnp.take(emb_table.astype(jnp.bfloat16), x_ids, axis=0).astype(jnp.float32)
    emb_sum = jnp.sum(emb, axis=1).astype(jnp.bfloat16)
    rep = (emb_sum.astype(jnp.float32) / lengths[:, None]).astype(jnp.bfloat16)
    h = jnp.dot(rep, w1.astype(jnp.bfloat16), preferred_element_type=jnp.float32) + b1
    h = jnp.maximum(h, 0.0)
    return (
        jnp.dot(h.astype(jnp.bfloat16), w2.astype(jnp.bfloat16),
                preferred_element_type=jnp.float32)
        + b2
    )


if __name__ == "__main__":
    # Small shapes consistent with the module's forward.
    B, SEQ, V, DIM = 2, 8, 64, 32
    LATENT = 1024          # LATENT_SIZE in the module
    OUT = 4                # output_size (number of classes)

    key = jax.random.PRNGKey(0)
    k_emb, k_ids, k_w1, k_b1, k_w2, k_b2 = jax.random.split(key, 6)

    # Deterministic "pretrained" embedding table (row 0 = padding idx, zeroed)
    # and linear-layer params.
    emb_table = jax.random.normal(k_emb, (V, DIM), dtype=jnp.float32)
    emb_table = emb_table.at[0].set(0.0)
    w1 = jax.random.normal(k_w1, (DIM, LATENT), dtype=jnp.float32) * (1.0 / jnp.sqrt(DIM))
    b1 = jax.random.normal(k_b1, (LATENT,), dtype=jnp.float32) * 0.01
    w2 = jax.random.normal(k_w2, (LATENT, OUT), dtype=jnp.float32) * (1.0 / jnp.sqrt(LATENT))
    b2 = jax.random.normal(k_b2, (OUT,), dtype=jnp.float32) * 0.01

    # Token ids (0 = pad) and per-sample lengths.
    x_ids = jax.random.randint(k_ids, (B, SEQ), 1, V, dtype=jnp.int32)
    x_ids = x_ids.at[1, 6:].set(0)                     # sample 1 padded to len 6
    lengths = jnp.array([SEQ, SEQ - 2], dtype=jnp.float32)

    logits = baseline_dnn_forward(x_ids, lengths, emb_table, w1, b1, w2, b2)
    logits = jax.block_until_ready(logits)

    ref = _reference_forward(x_ids, lengths, emb_table, w1, b1, w2, b2)
    assert logits.shape == (B, OUT)
    assert jnp.allclose(logits, ref, atol=5e-2, rtol=2e-2), "mismatch vs reference"

    print("KERNEL_OK")
</pallas_src>

<mosaic_0001>
module attributes {stable_mosaic.version = 11 : i64} {
  func.func @_baseline_dnn_kernel(%arg0: i32, %arg1: memref<8x128xbf16, #tpu.memory_space<vmem>>, %arg2: memref<8x1xf32, #tpu.memory_space<vmem>>, %arg3: memref<128x1024xbf16, #tpu.memory_space<vmem>>, %arg4: memref<1x1024xf32, #tpu.memory_space<vmem>>, %arg5: memref<1024x128xbf16, #tpu.memory_space<vmem>>, %arg6: memref<1x128xf32, #tpu.memory_space<vmem>>, %arg7: memref<8x128xbf16, #tpu.memory_space<vmem>>) attributes {dimension_semantics = [#tpu.dimension_semantics<parallel>], iteration_bounds = array<i64: 1>, scalar_prefetch = 0 : i64, scratch_operands = 0 : i64, tpu.core_type = #tpu.core_type<tc>, window_params = [{transform_indices = @transform_0, window_bounds = array<i64: 8, 128>}, {transform_indices = @transform_1, window_bounds = array<i64: 8, 1>}, {pipeline_mode = #tpu.pipeline_mode<synchronous>, transform_indices = @transform_2, window_bounds = array<i64: 128, 1024>}, {pipeline_mode = #tpu.pipeline_mode<synchronous>, transform_indices = @transform_3, window_bounds = array<i64: 1, 1024>}, {pipeline_mode = #tpu.pipeline_mode<synchronous>, transform_indices = @transform_4, window_bounds = array<i64: 1024, 128>}, {pipeline_mode = #tpu.pipeline_mode<synchronous>, transform_indices = @transform_5, window_bounds = array<i64: 1, 128>}, {transform_indices = @transform_6, window_bounds = array<i64: 8, 128>}]} {
    %c0 = arith.constant 0 : index
    %c0_0 = arith.constant 0 : index
    %0 = vector.load %arg2[%c0, %c0_0] : memref<8x1xf32, #tpu.memory_space<vmem>>, vector<8x1xf32>
    %1 = tpu.reciprocal %0 {approx = true} : vector<8x1xf32> -> vector<8x1xf32>
    %c0_1 = arith.constant 0 : index
    %c0_2 = arith.constant 0 : index
    %2 = vector.load %arg1[%c0_1, %c0_2] : memref<8x128xbf16, #tpu.memory_space<vmem>>, vector<8x128xbf16>
    %3 = arith.extf %2 : vector<8x128xbf16> to vector<8x128xf32>
    %4 = vector.broadcast %1 : vector<8x1xf32> to vector<8x128xf32>
    %5 = arith.mulf %3, %4 : vector<8x128xf32>
    %6 = arith.truncf %5 : vector<8x128xf32> to vector<8x128xbf16>
    %c0_3 = arith.constant 0 : index
    %c0_4 = arith.constant 0 : index
    %7 = vector.load %arg3[%c0_3, %c0_4] : memref<128x1024xbf16, #tpu.memory_space<vmem>>, vector<128x1024xbf16>
    %cst = arith.constant dense<0.000000e+00> : vector<8x1024xf32>
    %8 = tpu.matmul %6, %7, %cst {dimension_numbers = #tpu.dot_dimension_numbers<[1], [0], [0], [1], [0, 0, 1, 1], [], []>} : vector<8x128xbf16>, vector<128x1024xbf16>, vector<8x1024xf32> -> vector<8x1024xf32>
    %c0_5 = arith.constant 0 : index
    %c0_6 = arith.constant 0 : index
    %9 = vector.load %arg4[%c0_5, %c0_6] : memref<1x1024xf32, #tpu.memory_space<vmem>>, vector<1x1024xf32>
    %10 = vector.broadcast %9 : vector<1x1024xf32> to vector<8x1024xf32>
    %11 = arith.addf %8, %10 : vector<8x1024xf32>
    %cst_7 = arith.constant 0.000000e+00 : f32
    %12 = vector.broadcast %cst_7 : f32 to vector<8x1024xf32>
    %13 = arith.maximumf %11, %12 : vector<8x1024xf32>
    %14 = arith.truncf %13 : vector<8x1024xf32> to vector<8x1024xbf16>
    %c0_8 = arith.constant 0 : index
    %c0_9 = arith.constant 0 : index
    %15 = vector.load %arg5[%c0_8, %c0_9] : memref<1024x128xbf16, #tpu.memory_space<vmem>>, vector<1024x128xbf16>
    %cst_10 = arith.constant dense<0.000000e+00> : vector<8x128xf32>
    %16 = tpu.matmul %14, %15, %cst_10 {dimension_numbers = #tpu.dot_dimension_numbers<[1], [0], [0], [1], [0, 0, 1, 1], [], []>} : vector<8x1024xbf16>, vector<1024x128xbf16>, vector<8x128xf32> -> vector<8x128xf32>
    %c0_11 = arith.constant 0 : index
    %c0_12 = arith.constant 0 : index
    %17 = vector.load %arg6[%c0_11, %c0_12] : memref<1x128xf32, #tpu.memory_space<vmem>>, vector<1x128xf32>
    %18 = vector.broadcast %17 : vector<1x128xf32> to vector<8x128xf32>
    %19 = arith.addf %16, %18 : vector<8x128xf32>
    %20 = arith.truncf %19 : vector<8x128xf32> to vector<8x128xbf16>
    %c0_13 = arith.constant 0 : index
    %c0_14 = arith.constant 0 : index
    %21 = vector.load %arg7[%c0_13, %c0_14] : memref<8x128xbf16, #tpu.memory_space<vmem>>, vector<8x128xbf16>
    tpu.vector_store %arg7[%c0_13, %c0_14], %20 {strides = array<i32>} : memref<8x128xbf16, #tpu.memory_space<vmem>>, vector<8x128xbf16>,
    return
  }
  func.func @transform_0(%arg0: i32) -> (i32, i32) {
    %c0_i32 = arith.constant 0 : i32
    %c0_i32_0 = arith.constant 0 : i32
    return %arg0, %c0_i32 : i32, i32
  }
  func.func @transform_1(%arg0: i32) -> (i32, i32) {
    %c0_i32 = arith.constant 0 : i32
    %c0_i32_0 = arith.constant 0 : i32
    return %arg0, %c0_i32 : i32, i32
  }
  func.func @transform_2(%arg0: i32) -> (i32, i32) {
    %c0_i32 = arith.constant 0 : i32
    %c0_i32_0 = arith.constant 0 : i32
    %c0_i32_1 = arith.constant 0 : i32
    return %c0_i32, %c0_i32_0 : i32, i32
  }
  func.func @transform_3(%arg0: i32) -> (i32, i32) {
    %c0_i32 = arith.constant 0 : i32
    %c0_i32_0 = arith.constant 0 : i32
    %c0_i32_1 = arith.constant 0 : i32
    return %c0_i32, %c0_i32_0 : i32, i32
  }
  func.func @transform_4(%arg0: i32) -> (i32, i32) {
    %c0_i32 = arith.constant 0 : i32
    %c0_i32_0 = arith.constant 0 : i32
    %c0_i32_1 = arith.constant 0 : i32
    return %c0_i32, %c0_i32_0 : i32, i32
  }
  func.func @transform_5(%arg0: i32) -> (i32, i32) {
    %c0_i32 = arith.constant 0 : i32
    %c0_i32_0 = arith.constant 0 : i32
    %c0_i32_1 = arith.constant 0 : i32
    return %c0_i32, %c0_i32_0 : i32, i32
  }
  func.func @transform_6(%arg0: i32) -> (i32, i32) {
    %c0_i32 = arith.constant 0 : i32
    %c0_i32_0 = arith.constant 0 : i32
    return %arg0, %c0_i32 : i32, i32
  }
}

</mosaic_0001>

<llo_original>
// kernel: tpu_custom_call.1
$region0: #{tpu_custom_call.1}
  #allocation0 [shape = 'u32[]', space=smem, size = 0x4, offset = 0x4, fixed_abs, tag = 'smem constant byte address 0x4 - core index']
  #allocation1 [shape = 'u32[144,128]{1,0:T(1,128)}', space=vmem, size = 0x12000, scoped, tag = 'internal scratch']
  %s0 = inlined_call_operand.vmem [shape: bf16[8,128], index: 0, kind: input, shape index: {}]
  %s1 = inlined_call_operand.vmem [shape: f32[8,1], index: 1, kind: input, shape index: {}]
  %s2 = inlined_call_operand.hbm [shape: bf16[128,1024], index: 2, kind: input, shape index: {}]
  %s3 = inlined_call_operand.vmem [shape: f32[1,1024], index: 3, kind: input, shape index: {}]
  %s4 = inlined_call_operand.hbm [shape: bf16[1024,128], index: 4, kind: input, shape index: {}]
  %s5 = inlined_call_operand.vmem [shape: f32[1,128], index: 5, kind: input, shape index: {}]
  %s6 = inlined_call_operand.hbm [shape: bf16[8,128], index: 6, kind: output, shape index: {}]
  %s7 = sld [smem:[#allocation0]]
  $region42: #{tpu_custom_call.1} parent=0
    _
  %s9 = ssub.s32 1, %s7
  %s10 = scalar_select 0, %s9, %s7
  $region1: #{tpu_custom_call.1} parent=0
    #allocation2 [shape = 'u8[262144]{0}', space=vmem, size = 0x40000, scoped, tag = 'input window, operand 2, single buffered']
    #allocation3 [shape = 's32[1]{0}', space=sflag, size = 0x4, scoped, tag = 'scoped memory for tpu_custom_call.1']
    #allocation4 [shape = 's32[1]{0}', space=sflag, size = 0x4, scoped, tag = 'scoped memory for tpu_custom_call.1']
    #allocation5 [shape = 'u8[262144]{0}', space=vmem, size = 0x40000, scoped, tag = 'input window, operand 4, single buffered']
    #allocation6 [shape = 's32[1]{0}', space=sflag, size = 0x4, scoped, tag = 'scoped memory for tpu_custom_call.1']
    #allocation7 [shape = 'u8[2048]{0}', space=vmem, size = 0x800, scoped, tag = 'output window, operand 0, single buffered']
    %11 = vsyncpa [#allocation3], 0
    %12 = vsyncpa [#allocation6], 0
    %13 = vsyncpa [#allocation4], 0
    // Predicated region
    $region2: #{tpu_custom_call.1} parent=1 // pred_check
      _
    $region3: #{tpu_custom_call.1} parent=1 // pred_check_branch
      %15 = sbr.rel (0) target = $region5
    $region4: #{tpu_custom_call.1} parent=1 // pred_region
      _
    $region5: #{tpu_custom_call.1} parent=1 // pred_fallthru
      _
    // Predicated region
    $region6: #{tpu_custom_call.1} parent=1 // pred_check
      _
    $region7: #{tpu_custom_call.1} parent=1 // pred_check_branch
      %17 = sbr.rel (0) target = $region9
    $region8: #{tpu_custom_call.1} parent=1 // pred_region
      _
    $region9: #{tpu_custom_call.1} parent=1 // pred_fallthru
      _
    // Predicated region
    $region10: #{tpu_custom_call.1} parent=1 // pred_check
      _
    $region11: #{tpu_custom_call.1} parent=1 // pred_check_branch
      %19 = sbr.rel (0) target = $region13
    $region12: #{tpu_custom_call.1} parent=1 // pred_region
      %s21 = ssub.s32 8192, 8192
      %22 = vsyncadd [#allocation3], %s21
      %s23 = sshll.u32 [#allocation2], 4
      %s24 = int_to_ptr.vmem [resolvable:$true] %s23
      %29 = dma.hbm_to_vmem [thread:$0]  %s2, 8192, %s24, [#allocation3], 512, 512, 32
    $region13: #{tpu_custom_call.1} parent=1 // pred_fallthru
      _
    // Predicated region
    $region14: #{tpu_custom_call.1} parent=1 // pred_check
      _
    $region15: #{tpu_custom_call.1} parent=1 // pred_check_branch
      %31 = sbr.rel (0) target = $region17
    $region16: #{tpu_custom_call.1} parent=1 // pred_region
      _
    $region17: #{tpu_custom_call.1} parent=1 // pred_fallthru
      _
    // Predicated region
    $region18: #{tpu_custom_call.1} parent=1 // pred_check
      _
    $region19: #{tpu_custom_call.1} parent=1 // pred_check_branch
      %33 = sbr.rel (0) target = $region21
    $region20: #{tpu_custom_call.1} parent=1 // pred_region
      %s35 = ssub.s32 8192, 8192
      %36 = vsyncadd [#allocation6], %s35
      %s37 = sshll.u32 [#allocation5], 4
      %s38 = int_to_ptr.vmem [resolvable:$true] %s37
      %43 = dma.hbm_to_vmem [thread:$0]  %s4, 8192, %s38, [#allocation6], 64, 64, 4
    $region21: #{tpu_custom_call.1} parent=1 // pred_fallthru
      _
    // Predicated region
    $region22: #{tpu_custom_call.1} parent=1 // pred_check
      _
    $region23: #{tpu_custom_call.1} parent=1 // pred_check_branch
      %45 = sbr.rel (0) target = $region25
    $region24: #{tpu_custom_call.1} parent=1 // pred_region
      _
    $region25: #{tpu_custom_call.1} parent=1 // pred_fallthru
      _
    // Predicated region
    $region26: #{tpu_custom_call.1} parent=1 // pred_check
      _
    $region27: #{tpu_custom_call.1} parent=1 // pred_check_branch
      %47 = sbr.rel (0) target = $region29
    $region28: #{tpu_custom_call.1} parent=1 // pred_region
      %48 = dma.done [#allocation3], 8192
    $region29: #{tpu_custom_call.1} parent=1 // pred_fallthru
      _
    // Predicated region
    $region30: #{tpu_custom_call.1} parent=1 // pred_check
      _
    $region31: #{tpu_custom_call.1} parent=1 // pred_check_branch
      %50 = sbr.rel (0) target = $region33
    $region32: #{tpu_custom_call.1} parent=1 // pred_region
      %51 = dma.done [#allocation6], 8192
    $region33: #{tpu_custom_call.1} parent=1 // pred_fallthru
      _
    %v53 = vld [vmem:[%s1] sm:$0xff]
    %v54 = vrcp.pop %v53
    %v55 = vld [vmem:[%s0] sm:$0xf]
    %v56 = vunpack.c.l.bf16 %v55
    %58 = vset.pattern.permute.xlu0 0
    %59 = vperm.xlu0 %58, %v54
    %v60 = vpop.permute.xlu0 %59
    %v62 = vmul.f32 %v56, %v60
    %v63 = vpack.c.bf16 %v62, %v62
    %v64 = vld [vmem:[#allocation2] sm:$0xff]
    %v65 = vld [vmem:[#allocation2 + $0x8] sm:$0xff]
    %v66 = vld [vmem:[#allocation2 + $0x10] sm:$0xff]
    %v67 = vld [vmem:[#allocation2 + $0x18] sm:$0xff]
    %v68 = vld [vmem:[#allocation2 + $0x20] sm:$0xff]
    %v69 = vld [vmem:[#allocation2 + $0x28] sm:$0xff]
    %v70 = vld [vmem:[#allocation2 + $0x30] sm:$0xff]
    %v71 = vld [vmem:[#allocation2 + $0x38] sm:$0xff]
    %v72 = vld [vmem:[#allocation2 + $0x40] sm:$0xff]
    %v73 = vld [vmem:[#allocation2 + $0x48] sm:$0xff]
    %v74 = vld [vmem:[#allocation2 + $0x50] sm:$0xff]
    %v75 = vld [vmem:[#allocation2 + $0x58] sm:$0xff]
    %v76 = vld [vmem:[#allocation2 + $0x60] sm:$0xff]
    %v77 = vld [vmem:[#allocation2 + $0x68] sm:$0xff]
    %v78 = vld [vmem:[#allocation2 + $0x70] sm:$0xff]
    %v79 = vld [vmem:[#allocation2 + $0x78] sm:$0xff]
    %v80 = vld [vmem:[#allocation2 + $0x80] sm:$0xff]
    %v81 = vld [vmem:[#allocation2 + $0x88] sm:$0xff]
    %v82 = vld [vmem:[#allocation2 + $0x90] sm:$0xff]
    %v83 = vld [vmem:[#allocation2 + $0x98] sm:$0xff]
    %v84 = vld [vmem:[#allocation2 + $0xa0] sm:$0xff]
    %v85 = vld [vmem:[#allocation2 + $0xa8] sm:$0xff]
    %v86 = vld [vmem:[#allocation2 + $0xb0] sm:$0xff]
    %v87 = vld [vmem:[#allocation2 + $0xb8] sm:$0xff]
    %v88 = vld [vmem:[#allocation2 + $0xc0] sm:$0xff]
    %v89 = vld [vmem:[#allocation2 + $0xc8] sm:$0xff]
    %v90 = vld [vmem:[#allocation2 + $0xd0] sm:$0xff]
    %v91 = vld [vmem:[#allocation2 + $0xd8] sm:$0xff]
    %v92 = vld [vmem:[#allocation2 + $0xe0] sm:$0xff]
    %v93 = vld [vmem:[#allocation2 + $0xe8] sm:$0xff]
    %v94 = vld [vmem:[#allocation2 + $0xf0] sm:$0xff]
    %v95 = vld [vmem:[#allocation2 + $0xf8] sm:$0xff]
    %v96 = vld [vmem:[#allocation2 + $0x100] sm:$0xff]
    %v97 = vld [vmem:[#allocation2 + $0x108] sm:$0xff]
    %v98 = vld [vmem:[#allocation2 + $0x110] sm:$0xff]
    %v99 = vld [vmem:[#allocation2 + $0x118] sm:$0xff]
    %v100 = vld [vmem:[#allocation2 + $0x120] sm:$0xff]
    %v101 = vld [vmem:[#allocation2 + $0x128] sm:$0xff]
    %v102 = vld [vmem:[#allocation2 + $0x130] sm:$0xff]
    %v103 = vld [vmem:[#allocation2 + $0x138] sm:$0xff]
    %v104 = vld [vmem:[#allocation2 + $0x140] sm:$0xff]
    %v105 = vld [vmem:[#allocation2 + $0x148] sm:$0xff]
    %v106 = vld [vmem:[#allocation2 + $0x150] sm:$0xff]
    %v107 = vld [vmem:[#allocation2 + $0x158] sm:$0xff]
    %v108 = vld [vmem:[#allocation2 + $0x160] sm:$0xff]
    %v109 = vld [vmem:[#allocation2 + $0x168] sm:$0xff]
    %v110 = vld [vmem:[#allocation2 + $0x170] sm:$0xff]
    %v111 = vld [vmem:[#allocation2 + $0x178] sm:$0xff]
    %v112 = vld [vmem:[#allocation2 + $0x180] sm:$0xff]
    %v113 = vld [vmem:[#allocation2 + $0x188] sm:$0xff]
    %v114 = vld [vmem:[#allocation2 + $0x190] sm:$0xff]
    %v115 = vld [vmem:[#allocation2 + $0x198] sm:$0xff]
    %v116 = vld [vmem:[#allocation2 + $0x1a0] sm:$0xff]
    %v117 = vld [vmem:[#allocation2 + $0x1a8] sm:$0xff]
    %v118 = vld [vmem:[#allocation2 + $0x1b0] sm:$0xff]
    %v119 = vld [vmem:[#allocation2 + $0x1b8] sm:$0xff]
    %v120 = vld [vmem:[#allocation2 + $0x1c0] sm:$0xff]
    %v121 = vld [vmem:[#allocation2 + $0x1c8] sm:$0xff]
    %v122 = vld [vmem:[#allocation2 + $0x1d0] sm:$0xff]
    %v123 = vld [vmem:[#allocation2 + $0x1d8] sm:$0xff]
    %v124 = vld [vmem:[#allocation2 + $0x1e0] sm:$0xff]
    %v125 = vld [vmem:[#allocation2 + $0x1e8] sm:$0xff]
    %v126 = vld [vmem:[#allocation2 + $0x1f0] sm:$0xff]
    %v127 = vld [vmem:[#allocation2 + $0x1f8] sm:$0xff]
    %v128 = vld [vmem:[%s3] sm:$0xff]
    %v130 = vlaneseq
    %v131 = vshrl.u32 %v130, 7
    %v132 = vsub.s32 0, %v131
    %v133 = vrot.slane %v128, %v132
    %v134 = vlaneseq
    %v135 = vshrl.u32 %v134, 7
    %v136 = vsub.s32 1, %v135
    %v137 = vrot.slane %v128, %v136
    %v138 = vlaneseq
    %v139 = vshrl.u32 %v138, 7
    %v140 = vsub.s32 2, %v139
    %v141 = vrot.slane %v128, %v140
    %v142 = vlaneseq
    %v143 = vshrl.u32 %v142, 7
    %v144 = vsub.s32 3, %v143
    %v145 = vrot.slane %v128, %v144
    %v146 = vlaneseq
    %v147 = vshrl.u32 %v146, 7
    %v148 = vsub.s32 4, %v147
    %v149 = vrot.slane %v128, %v148
    %v150 = vlaneseq
    %v151 = vshrl.u32 %v150, 7
    %v152 = vsub.s32 5, %v151
    %v153 = vrot.slane %v128, %v152
    %v154 = vlaneseq
    %v155 = vshrl.u32 %v154, 7
    %v156 = vsub.s32 6, %v155
    %v157 = vrot.slane %v128, %v156
    %v158 = vlaneseq
    %v159 = vshrl.u32 %v158, 7
    %v160 = vsub.s32 7, %v159
    %v161 = vrot.slane %v128, %v160
    %v234 = vunpack.c.l.b16 %v64
    %v235 = vunpack.c.h.b16 %v64
    %v236 = vunpack.c.l.b16 %v65
    %v237 = vunpack.c.h.b16 %v65
    %v238 = vunpack.c.l.b16 %v66
    %v239 = vunpack.c.h.b16 %v66
    %v240 = vunpack.c.l.b16 %v67
    %v241 = vunpack.c.h.b16 %v67
    %v242 = vunpack.c.l.b16 %v68
    %v243 = vunpack.c.h.b16 %v68
    %v244 = vunpack.c.l.b16 %v69
    %v245 = vunpack.c.h.b16 %v69
    %v246 = vunpack.c.l.b16 %v70
    %v247 = vunpack.c.h.b16 %v70
    %v248 = vunpack.c.l.b16 %v71
    %v249 = vunpack.c.h.b16 %v71
    %v250 = vunpack.c.l.b16 %v72
    %v251 = vunpack.c.h.b16 %v72
    %v252 = vunpack.c.l.b16 %v73
    %v253 = vunpack.c.h.b16 %v73
    %v254 = vunpack.c.l.b16 %v74
    %v255 = vunpack.c.h.b16 %v74
    %v256 = vunpack.c.l.b16 %v75
    %v257 = vunpack.c.h.b16 %v75
    %v258 = vunpack.c.l.b16 %v76
    %v259 = vunpack.c.h.b16 %v76
    %v260 = vunpack.c.l.b16 %v77
    %v261 = vunpack.c.h.b16 %v77
    %v262 = vunpack.c.l.b16 %v78
    %v263 = vunpack.c.h.b16 %v78
    %v264 = vunpack.c.l.b16 %v79
    %v265 = vunpack.c.h.b16 %v79
    %v266 = vunpack.c.l.b16 %v80
    %v267 = vunpack.c.h.b16 %v80
    %v268 = vunpack.c.l.b16 %v81
    %v269 = vunpack.c.h.b16 %v81
    %v270 = vunpack.c.l.b16 %v82
    %v271 = vunpack.c.h.b16 %v82
    %v272 = vunpack.c.l.b16 %v83
    %v273 = vunpack.c.h.b16 %v83
    %v274 = vunpack.c.l.b16 %v84
    %v275 = vunpack.c.h.b16 %v84
    %v276 = vunpack.c.l.b16 %v85
    %v277 = vunpack.c.h.b16 %v85
    %v278 = vunpack.c.l.b16 %v86
    %v279 = vunpack.c.h.b16 %v86
    %v280 = vunpack.c.l.b16 %v87
    %v281 = vunpack.c.h.b16 %v87
    %v282 = vunpack.c.l.b16 %v88
    %v283 = vunpack.c.h.b16 %v88
    %v284 = vunpack.c.l.b16 %v89
    %v285 = vunpack.c.h.b16 %v89
    %v286 = vunpack.c.l.b16 %v90
    %v287 = vunpack.c.h.b16 %v90
    %v288 = vunpack.c.l.b16 %v91
    %v289 = vunpack.c.h.b16 %v91
    %v290 = vunpack.c.l.b16 %v92
    %v291 = vunpack.c.h.b16 %v92
    %v292 = vunpack.c.l.b16 %v93
    %v293 = vunpack.c.h.b16 %v93
    %v294 = vunpack.c.l.b16 %v94
    %v295 = vunpack.c.h.b16 %v94
    %v296 = vunpack.c.l.b16 %v95
    %v297 = vunpack.c.h.b16 %v95
    %v298 = vunpack.c.l.b16 %v96
    %v299 = vunpack.c.h.b16 %v96
    %v300 = vunpack.c.l.b16 %v97
    %v301 = vunpack.c.h.b16 %v97
    %v302 = vunpack.c.l.b16 %v98
    %v303 = vunpack.c.h.b16 %v98
    %v304 = vunpack.c.l.b16 %v99
    %v305 = vunpack.c.h.b16 %v99
    %v306 = vunpack.c.l.b16 %v100
    %v307 = vunpack.c.h.b16 %v100
    %v308 = vunpack.c.l.b16 %v101
    %v309 = vunpack.c.h.b16 %v101
    %v310 = vunpack.c.l.b16 %v102
    %v311 = vunpack.c.h.b16 %v102
    %v312 = vunpack.c.l.b16 %v103
    %v313 = vunpack.c.h.b16 %v103
    %v314 = vunpack.c.l.b16 %v104
    %v315 = vunpack.c.h.b16 %v104
    %v316 = vunpack.c.l.b16 %v105
    %v317 = vunpack.c.h.b16 %v105
    %v318 = vunpack.c.l.b16 %v106
    %v319 = vunpack.c.h.b16 %v106
    %v320 = vunpack.c.l.b16 %v107
    %v321 = vunpack.c.h.b16 %v107
    %v322 = vunpack.c.l.b16 %v108
    %v323 = vunpack.c.h.b16 %v108
    %v324 = vunpack.c.l.b16 %v109
    %v325 = vunpack.c.h.b16 %v109
    %v326 = vunpack.c.l.b16 %v110
    %v327 = vunpack.c.h.b16 %v110
    %v328 = vunpack.c.l.b16 %v111
    %v329 = vunpack.c.h.b16 %v111
    %v330 = vunpack.c.l.b16 %v112
    %v331 = vunpack.c.h.b16 %v112
    %v332 = vunpack.c.l.b16 %v113
    %v333 = vunpack.c.h.b16 %v113
    %v334 = vunpack.c.l.b16 %v114
    %v335 = vunpack.c.h.b16 %v114
    %v336 = vunpack.c.l.b16 %v115
    %v337 = vunpack.c.h.b16 %v115
    %v338 = vunpack.c.l.b16 %v116
    %v339 = vunpack.c.h.b16 %v116
    %v340 = vunpack.c.l.b16 %v117
    %v341 = vunpack.c.h.b16 %v117
    %v342 = vunpack.c.l.b16 %v118
    %v343 = vunpack.c.h.b16 %v118
    %v344 = vunpack.c.l.b16 %v119
    %v345 = vunpack.c.h.b16 %v119
    %v346 = vunpack.c.l.b16 %v120
    %v347 = vunpack.c.h.b16 %v120
    %v348 = vunpack.c.l.b16 %v121
    %v349 = vunpack.c.h.b16 %v121
    %v350 = vunpack.c.l.b16 %v122
    %v351 = vunpack.c.h.b16 %v122
    %v352 = vunpack.c.l.b16 %v123
    %v353 = vunpack.c.h.b16 %v123
    %v354 = vunpack.c.l.b16 %v124
    %v355 = vunpack.c.h.b16 %v124
    %v356 = vunpack.c.l.b16 %v125
    %v357 = vunpack.c.h.b16 %v125
    %v358 = vunpack.c.l.b16 %v126
    %v359 = vunpack.c.h.b16 %v126
    %v360 = vunpack.c.l.b16 %v127
    %v361 = vunpack.c.h.b16 %v127
    %v362 = vpack.c.b16 %v242, %v234
    %v363 = vpack.c.b16 %v243, %v235
    %v364 = vpack.c.b16 %v244, %v236
    %v365 = vpack.c.b16 %v245, %v237
    %v366 = vpack.c.b16 %v246, %v238
    %v367 = vpack.c.b16 %v247, %v239
    %v368 = vpack.c.b16 %v248, %v240
    %v369 = vpack.c.b16 %v249, %v241
    %v370 = vpack.c.b16 %v258, %v250
    %v371 = vpack.c.b16 %v259, %v251
    %v372 = vpack.c.b16 %v260, %v252
    %v373 = vpack.c.b16 %v261, %v253
    %v374 = vpack.c.b16 %v262, %v254
    %v375 = vpack.c.b16 %v263, %v255
    %v376 = vpack.c.b16 %v264, %v256
    %v377 = vpack.c.b16 %v265, %v257
    %v378 = vpack.c.b16 %v274, %v266
    %v379 = vpack.c.b16 %v275, %v267
    %v380 = vpack.c.b16 %v276, %v268
    %v381 = vpack.c.b16 %v277, %v269
    %v382 = vpack.c.b16 %v278, %v270
    %v383 = vpack.c.b16 %v279, %v271
    %v384 = vpack.c.b16 %v280, %v272
    %v385 = vpack.c.b16 %v281, %v273
    %v386 = vpack.c.b16 %v290, %v282
    %v387 = vpack.c.b16 %v291, %v283
    %v388 = vpack.c.b16 %v292, %v284
    %v389 = vpack.c.b16 %v293, %v285
    %v390 = vpack.c.b16 %v294, %v286
    %v391 = vpack.c.b16 %v295, %v287
    %v392 = vpack.c.b16 %v296, %v288
    %v393 = vpack.c.b16 %v297, %v289
    %v394 = vpack.c.b16 %v306, %v298
    %v395 = vpack.c.b16 %v307, %v299
    %v396 = vpack.c.b16 %v308, %v300
    %v397 = vpack.c.b16 %v309, %v301
    %v398 = vpack.c.b16 %v310, %v302
    %v399 = vpack.c.b16 %v311, %v303
    %v400 = vpack.c.b16 %v312, %v304
    %v401 = vpack.c.b16 %v313, %v305
    %v402 = vpack.c.b16 %v322, %v314
    %v403 = vpack.c.b16 %v323, %v315
    %v404 = vpack.c.b16 %v324, %v316
    %v405 = vpack.c.b16 %v325, %v317
    %v406 = vpack.c.b16 %v326, %v318
    %v407 = vpack.c.b16 %v327, %v319
    %v408 = vpack.c.b16 %v328, %v320
    %v409 = vpack.c.b16 %v329, %v321
    %v410 = vpack.c.b16 %v338, %v330
    %v411 = vpack.c.b16 %v339, %v331
    %v412 = vpack.c.b16 %v340, %v332
    %v413 = vpack.c.b16 %v341, %v333
    %v414 = vpack.c.b16 %v342, %v334
    %v415 = vpack.c.b16 %v343, %v335
    %v416 = vpack.c.b16 %v344, %v336
    %v417 = vpack.c.b16 %v345, %v337
    %v418 = vpack.c.b16 %v354, %v346
    %v419 = vpack.c.b16 %v355, %v347
    %v420 = vpack.c.b16 %v356, %v348
    %v421 = vpack.c.b16 %v357, %v349
    %v422 = vpack.c.b16 %v358, %v350
    %v423 = vpack.c.b16 %v359, %v351
    %v424 = vpack.c.b16 %v360, %v352
    %v425 = vpack.c.b16 %v361, %v353
    %490 = vmatprep.subr.bf16.mxu0 %v419
    %491 = vmatpush1.bf16.msra.mxu0 %v418
    %492 = vmatprep.subr.bf16.mxu0 %v411
    %493 = vmatpush1.bf16.msra.mxu0 %v410
    %494 = vmatprep.subr.bf16.mxu0 %v403
    %495 = vmatpush1.bf16.msra.mxu0 %v402
    %496 = vmatprep.subr.bf16.mxu0 %v395
    %497 = vmatpush1.bf16.msra.mxu0 %v394
    %498 = vmatprep.subr.bf16.mxu0 %v387
    %499 = vmatpush1.bf16.msra.mxu0 %v386
    %500 = vmatprep.subr.bf16.mxu0 %v379
    %501 = vmatpush1.bf16.msra.mxu0 %v378
    %502 = vmatprep.subr.bf16.mxu0 %v371
    %503 = vmatpush1.bf16.msra.mxu0 %v370
    %504 = vmatprep.subr.bf16.mxu0 %v363
    %505 = vmatpush1.bf16.msra.mxu0 %v362
    %506 = vmatprep.subr.bf16.mxu0 0
    %507 = vmatpush2.bf16.msra.mxu0 0
    %508 = vmatprep.subr.bf16.mxu0 0
    %509 = vmatpush2.bf16.msra.mxu0 0
    %510 = vmatprep.subr.bf16.mxu0 0
    %511 = vmatpush2.bf16.msra.mxu0 0
    %512 = vmatprep.subr.bf16.mxu0 0
    %513 = vmatpush2.bf16.msra.mxu0 0
    %514 = vmatprep.subr.bf16.mxu0 0
    %515 = vmatpush2.bf16.msra.mxu0 0
    %516 = vmatprep.subr.bf16.mxu0 0
    %517 = vmatpush2.bf16.msra.mxu0 0
    %518 = vmatprep.subr.bf16.mxu0 0
    %519 = vmatpush2.bf16.msra.mxu0 0
    %520 = vmatprep.subr.bf16.mxu0 0
    %521 = vmatpush2.bf16.msra.mxu0 0
    %522 = vmatprep.mubr.bf16.mxu0 0
    %523 = vmatmul.mubr.bf16.gmra.mxu0 %v63
    %v524 = vpop.f32.mrf.mxu0
    %v525 = vadd.f32 %v133, %v524
    %v526 = vpop.f32.mrf.mxu0
    %v527 = vadd.f32 %v137, %v526
    %v528 = vpop.f32.mrf.mxu0
    %v529 = vpop.f32.mrf.mxu0
    %530 = vdwg.mxu0
    %531 = vmatprep.subr.bf16.mxu0 %v421
    %532 = vmatpush1.bf16.msra.mxu0 %v420
    %533 = vmatprep.subr.bf16.mxu0 %v413
    %534 = vmatpush1.bf16.msra.mxu0 %v412
    %535 = vmatprep.subr.bf16.mxu0 %v405
    %536 = vmatpush1.bf16.msra.mxu0 %v404
    %537 = vmatprep.subr.bf16.mxu0 %v397
    %538 = vmatpush1.bf16.msra.mxu0 %v396
    %539 = vmatprep.subr.bf16.mxu0 %v389
    %540 = vmatpush1.bf16.msra.mxu0 %v388
    %541 = vmatprep.subr.bf16.mxu0 %v381
    %542 = vmatpush1.bf16.msra.mxu0 %v380
    %543 = vmatprep.subr.bf16.mxu0 %v373
    %544 = vmatpush1.bf16.msra.mxu0 %v372
    %545 = vmatprep.subr.bf16.mxu0 %v365
    %546 = vmatpush1.bf16.msra.mxu0 %v364
    %547 = vmatprep.subr.bf16.mxu0 0
    %548 = vmatpush2.bf16.msra.mxu0 0
    %549 = vmatprep.subr.bf16.mxu0 0
    %550 = vmatpush2.bf16.msra.mxu0 0
    %551 = vmatprep.subr.bf16.mxu0 0
    %552 = vmatpush2.bf16.msra.mxu0 0
    %553 = vmatprep.subr.bf16.mxu0 0
    %554 = vmatpush2.bf16.msra.mxu0 0
    %555 = vmatprep.subr.bf16.mxu0 0
    %556 = vmatpush2.bf16.msra.mxu0 0
    %557 = vmatprep.subr.bf16.mxu0 0
    %558 = vmatpush2.bf16.msra.mxu0 0
    %559 = vmatprep.subr.bf16.mxu0 0
    %560 = vmatpush2.bf16.msra.mxu0 0
    %561 = vmatprep.subr.bf16.mxu0 0
    %562 = vmatpush2.bf16.msra.mxu0 0
    %563 = vmatprep.mubr.bf16.mxu0 0
    %564 = vmatmul.mubr.bf16.gmra.mxu0 %v63
    %v565 = vpop.f32.mrf.mxu0
    %v566 = vadd.f32 %v141, %v565
    %v567 = vpop.f32.mrf.mxu0
    %v568 = vadd.f32 %v145, %v567
    %v569 = vpop.f32.mrf.mxu0
    %v570 = vpop.f32.mrf.mxu0
    %571 = vdwg.mxu0
    %572 = vmatprep.subr.bf16.mxu0 %v423
    %573 = vmatpush1.bf16.msra.mxu0 %v422
    %574 = vmatprep.subr.bf16.mxu0 %v415
    %575 = vmatpush1.bf16.msra.mxu0 %v414
    %576 = vmatprep.subr.bf16.mxu0 %v407
    %577 = vmatpush1.bf16.msra.mxu0 %v406
    %578 = vmatprep.subr.bf16.mxu0 %v399
    %579 = vmatpush1.bf16.msra.mxu0 %v398
    %580 = vmatprep.subr.bf16.mxu0 %v391
    %581 = vmatpush1.bf16.msra.mxu0 %v390
    %582 = vmatprep.subr.bf16.mxu0 %v383
    %583 = vmatpush1.bf16.msra.mxu0 %v382
    %584 = vmatprep.subr.bf16.mxu0 %v375
    %585 = vmatpush1.bf16.msra.mxu0 %v374
    %586 = vmatprep.subr.bf16.mxu0 %v367
    %587 = vmatpush1.bf16.msra.mxu0 %v366
    %588 = vmatprep.subr.bf16.mxu0 0
    %589 = vmatpush2.bf16.msra.mxu0 0
    %590 = vmatprep.subr.bf16.mxu0 0
    %591 = vmatpush2.bf16.msra.mxu0 0
    %592 = vmatprep.subr.bf16.mxu0 0
    %593 = vmatpush2.bf16.msra.mxu0 0
    %594 = vmatprep.subr.bf16.mxu0 0
    %595 = vmatpush2.bf16.msra.mxu0 0
    %596 = vmatprep.subr.bf16.mxu0 0
    %597 = vmatpush2.bf16.msra.mxu0 0
    %598 = vmatprep.subr.bf16.mxu0 0
    %599 = vmatpush2.bf16.msra.mxu0 0
    %600 = vmatprep.subr.bf16.mxu0 0
    %601 = vmatpush2.bf16.msra.mxu0 0
    %602 = vmatprep.subr.bf16.mxu0 0
    %603 = vmatpush2.bf16.msra.mxu0 0
    %604 = vmatprep.mubr.bf16.mxu0 0
    %605 = vmatmul.mubr.bf16.gmra.mxu0 %v63
    %v606 = vpop.f32.mrf.mxu0
    %v607 = vadd.f32 %v149, %v606
    %v608 = vpop.f32.mrf.mxu0
    %v609 = vadd.f32 %v153, %v608
    %v610 = vpop.f32.mrf.mxu0
    %v611 = vpop.f32.mrf.mxu0
    %612 = vdwg.mxu0
    %613 = vmatprep.subr.bf16.mxu0 %v425
    %614 = vmatpush1.bf16.msra.mxu0 %v424
    %615 = vmatprep.subr.bf16.mxu0 %v417
    %616 = vmatpush1.bf16.msra.mxu0 %v416
    %617 = vmatprep.subr.bf16.mxu0 %v409
    %618 = vmatpush1.bf16.msra.mxu0 %v408
    %619 = vmatprep.subr.bf16.mxu0 %v401
    %620 = vmatpush1.bf16.msra.mxu0 %v400
    %621 = vmatprep.subr.bf16.mxu0 %v393
    %622 = vmatpush1.bf16.msra.mxu0 %v392
    %623 = vmatprep.subr.bf16.mxu0 %v385
    %624 = vmatpush1.bf16.msra.mxu0 %v384
    %625 = vmatprep.subr.bf16.mxu0 %v377
    %626 = vmatpush1.bf16.msra.mxu0 %v376
    %627 = vmatprep.subr.bf16.mxu0 %v369
    %628 = vmatpush1.bf16.msra.mxu0 %v368
    %629 = vmatprep.subr.bf16.mxu0 0
    %630 = vmatpush2.bf16.msra.mxu0 0
    %631 = vmatprep.subr.bf16.mxu0 0
    %632 = vmatpush2.bf16.msra.mxu0 0
    %633 = vmatprep.subr.bf16.mxu0 0
    %634 = vmatpush2.bf16.msra.mxu0 0
    %635 = vmatprep.subr.bf16.mxu0 0
    %636 = vmatpush2.bf16.msra.mxu0 0
    %637 = vmatprep.subr.bf16.mxu0 0
    %638 = vmatpush2.bf16.msra.mxu0 0
    %639 = vmatprep.subr.bf16.mxu0 0
    %640 = vmatpush2.bf16.msra.mxu0 0
    %641 = vmatprep.subr.bf16.mxu0 0
    %642 = vmatpush2.bf16.msra.mxu0 0
    %643 = vmatprep.subr.bf16.mxu0 0
    %644 = vmatpush2.bf16.msra.mxu0 0
    %645 = vmatprep.mubr.bf16.mxu0 0
    %646 = vmatmul.mubr.bf16.gmra.mxu0 %v63
    %v647 = vpop.f32.mrf.mxu0
    %v648 = vadd.f32 %v157, %v647
    %v649 = vpop.f32.mrf.mxu0
    %v650 = vadd.f32 %v161, %v649
    %v651 = vpop.f32.mrf.mxu0
    %v652 = vpop.f32.mrf.mxu0
    %653 = vdwg.mxu0
    %v654 = vmax.f32 %v525, 0.0
    %v655 = vmax.f32 %v527, 0.0
    %v656 = vmax.f32 %v566, 0.0
    %v657 = vmax.f32 %v568, 0.0
    %v658 = vmax.f32 %v607, 0.0
    %v659 = vmax.f32 %v609, 0.0
    %v660 = vmax.f32 %v648, 0.0
    %v661 = vmax.f32 %v650, 0.0
    %v662 = vpack.c.bf16 %v654, %v654
    %v663 = vpack.c.bf16 %v655, %v655
    %v664 = vpack.c.bf16 %v656, %v656
    %v665 = vpack.c.bf16 %v657, %v657
    %v666 = vpack.c.bf16 %v658, %v658
    %v667 = vpack.c.bf16 %v659, %v659
    %v668 = vpack.c.bf16 %v660, %v660
    %v669 = vpack.c.bf16 %v661, %v661
    %v670 = vld [vmem:[#allocation5] sm:$0xf]
    %v671 = vld [vmem:[#allocation5 + $0x4] sm:$0xf]
    %v672 = vld [vmem:[#allocation5 + $0x8] sm:$0xf]
    %v673 = vld [vmem:[#allocation5 + $0xc] sm:$0xf]
    %v674 = vld [vmem:[#allocation5 + $0x10] sm:$0xf]
    %v675 = vld [vmem:[#allocation5 + $0x14] sm:$0xf]
    %v676 = vld [vmem:[#allocation5 + $0x18] sm:$0xf]
    %v677 = vld [vmem:[#allocation5 + $0x1c] sm:$0xf]
    %v678 = vld [vmem:[#allocation5 + $0x20] sm:$0xf]
    %v679 = vld [vmem:[#allocation5 + $0x24] sm:$0xf]
    %v680 = vld [vmem:[#allocation5 + $0x28] sm:$0xf]
    %v681 = vld [vmem:[#allocation5 + $0x2c] sm:$0xf]
    %v682 = vld [vmem:[#allocation5 + $0x30] sm:$0xf]
    %v683 = vld [vmem:[#allocation5 + $0x34] sm:$0xf]
    %v684 = vld [vmem:[#allocation5 + $0x38] sm:$0xf]
    %v685 = vld [vmem:[#allocation5 + $0x3c] sm:$0xf]
    %v686 = vld [vmem:[#allocation5 + $0x40] sm:$0xf]
    %v687 = vld [vmem:[#allocation5 + $0x44] sm:$0xf]
    %v688 = vld [vmem:[#allocation5 + $0x48] sm:$0xf]
    %v689 = vld [vmem:[#allocation5 + $0x4c] sm:$0xf]
    %v690 = vld [vmem:[#allocation5 + $0x50] sm:$0xf]
    %v691 = vld [vmem:[#allocation5 + $0x54] sm:$0xf]
    %v692 = vld [vmem:[#allocation5 + $0x58] sm:$0xf]
    %v693 = vld [vmem:[#allocation5 + $0x5c] sm:$0xf]
    %v694 = vld [vmem:[#allocation5 + $0x60] sm:$0xf]
    %v695 = vld [vmem:[#allocation5 + $0x64] sm:$0xf]
    %v696 = vld [vmem:[#allocation5 + $0x68] sm:$0xf]
    %v697 = vld [vmem:[#allocation5 + $0x6c] sm:$0xf]
    %v698 = vld [vmem:[#allocation5 + $0x70] sm:$0xf]
    %v699 = vld [vmem:[#allocation5 + $0x74] sm:$0xf]
    %v700 = vld [vmem:[#allocation5 + $0x78] sm:$0xf]
    %v701 = vld [vmem:[#allocation5 + $0x7c] sm:$0xf]
    %v702 = vld [vmem:[#allocation5 + $0x80] sm:$0xf]
    %v703 = vld [vmem:[#allocation5 + $0x84] sm:$0xf]
    %v704 = vld [vmem:[#allocation5 + $0x88] sm:$0xf]
    %v705 = vld [vmem:[#allocation5 + $0x8c] sm:$0xf]
    %v706 = vld [vmem:[#allocation5 + $0x90] sm:$0xf]
    %v707 = vld [vmem:[#allocation5 + $0x94] sm:$0xf]
    %v708 = vld [vmem:[#allocation5 + $0x98] sm:$0xf]
    %v709 = vld [vmem:[#allocation5 + $0x9c] sm:$0xf]
    %v710 = vld [vmem:[#allocation5 + $0xa0] sm:$0xf]
    %v711 = vld [vmem:[#allocation5 + $0xa4] sm:$0xf]
    %v712 = vld [vmem:[#allocation5 + $0xa8] sm:$0xf]
    %v713 = vld [vmem:[#allocation5 + $0xac] sm:$0xf]
    %v714 = vld [vmem:[#allocation5 + $0xb0] sm:$0xf]
    %v715 = vld [vmem:[#allocation5 + $0xb4] sm:$0xf]
    %v716 = vld [vmem:[#allocation5 + $0xb8] sm:$0xf]
    %v717 = vld [vmem:[#allocation5 + $0xbc] sm:$0xf]
    %v718 = vld [vmem:[#allocation5 + $0xc0] sm:$0xf]
    %v719 = vld [vmem:[#allocation5 + $0xc4] sm:$0xf]
    %v720 = vld [vmem:[#allocation5 + $0xc8] sm:$0xf]
    %v721 = vld [vmem:[#allocation5 + $0xcc] sm:$0xf]
    %v722 = vld [vmem:[#allocation5 + $0xd0] sm:$0xf]
    %v723 = vld [vmem:[#allocation5 + $0xd4] sm:$0xf]
    %v724 = vld [vmem:[#allocation5 + $0xd8] sm:$0xf]
    %v725 = vld [vmem:[#allocation5 + $0xdc] sm:$0xf]
    %v726 = vld [vmem:[#allocation5 + $0xe0] sm:$0xf]
    %v727 = vld [vmem:[#allocation5 + $0xe4] sm:$0xf]
    %v728 = vld [vmem:[#allocation5 + $0xe8] sm:$0xf]
    %v729 = vld [vmem:[#allocation5 + $0xec] sm:$0xf]
    %v730 = vld [vmem:[#allocation5 + $0xf0] sm:$0xf]
    %v731 = vld [vmem:[#allocation5 + $0xf4] sm:$0xf]
    %v732 = vld [vmem:[#allocation5 + $0xf8] sm:$0xf]
    %v733 = vld [vmem:[#allocation5 + $0xfc] sm:$0xf]
    %v734 = vld [vmem:[#allocation5 + $0x100] sm:$0xf]
    %v735 = vld [vmem:[#allocation5 + $0x104] sm:$0xf]
    %v736 = vld [vmem:[#allocation5 + $0x108] sm:$0xf]
    %v737 = vld [vmem:[#allocation5 + $0x10c] sm:$0xf]
    %v738 = vld [vmem:[#allocation5 + $0x110] sm:$0xf]
    %v739 = vld [vmem:[#allocation5 + $0x114] sm:$0xf]
    %v740 = vld [vmem:[#allocation5 + $0x118] sm:$0xf]
    %v741 = vld [vmem:[#allocation5 + $0x11c] sm:$0xf]
    %v742 = vld [vmem:[#allocation5 + $0x120] sm:$0xf]
    %v743 = vld [vmem:[#allocation5 + $0x124] sm:$0xf]
    %v744 = vld [vmem:[#allocation5 + $0x128] sm:$0xf]
    %v745 = vld [vmem:[#allocation5 + $0x12c] sm:$0xf]
    %v746 = vld [vmem:[#allocation5 + $0x130] sm:$0xf]
    %v747 = vld [vmem:[#allocation5 + $0x134] sm:$0xf]
    %v748 = vld [vmem:[#allocation5 + $0x138] sm:$0xf]
    %v749 = vld [vmem:[#allocation5 + $0x13c] sm:$0xf]
    %v750 = vld [vmem:[#allocation5 + $0x140] sm:$0xf]
    %v751 = vld [vmem:[#allocation5 + $0x144] sm:$0xf]
    %v752 = vld [vmem:[#allocation5 + $0x148] sm:$0xf]
    %v753 = vld [vmem:[#allocation5 + $0x14c] sm:$0xf]
    %v754 = vld [vmem:[#allocation5 + $0x150] sm:$0xf]
    %v755 = vld [vmem:[#allocation5 + $0x154] sm:$0xf]
    %v756 = vld [vmem:[#allocation5 + $0x158] sm:$0xf]
    %v757 = vld [vmem:[#allocation5 + $0x15c] sm:$0xf]
    %v758 = vld [vmem:[#allocation5 + $0x160] sm:$0xf]
    %v759 = vld [vmem:[#allocation5 + $0x164] sm:$0xf]
    %v760 = vld [vmem:[#allocation5 + $0x168] sm:$0xf]
    %v761 = vld [vmem:[#allocation5 + $0x16c] sm:$0xf]
    %v762 = vld [vmem:[#allocation5 + $0x170] sm:$0xf]
    %v763 = vld [vmem:[#allocation5 + $0x174] sm:$0xf]
    %v764 = vld [vmem:[#allocation5 + $0x178] sm:$0xf]
    %v765 = vld [vmem:[#allocation5 + $0x17c] sm:$0xf]
    %v766 = vld [vmem:[#allocation5 + $0x180] sm:$0xf]
    %v767 = vld [vmem:[#allocation5 + $0x184] sm:$0xf]
    %v768 = vld [vmem:[#allocation5 + $0x188] sm:$0xf]
    %v769 = vld [vmem:[#allocation5 + $0x18c] sm:$0xf]
    %v770 = vld [vmem:[#allocation5 + $0x190] sm:$0xf]
    %v771 = vld [vmem:[#allocation5 + $0x194] sm:$0xf]
    %v772 = vld [vmem:[#allocation5 + $0x198] sm:$0xf]
    %v773 = vld [vmem:[#allocation5 + $0x19c] sm:$0xf]
    %v774 = vld [vmem:[#allocation5 + $0x1a0] sm:$0xf]
    %v775 = vld [vmem:[#allocation5 + $0x1a4] sm:$0xf]
    %v776 = vld [vmem:[#allocation5 + $0x1a8] sm:$0xf]
    %v777 = vld [vmem:[#allocation5 + $0x1ac] sm:$0xf]
    %v778 = vld [vmem:[#allocation5 + $0x1b0] sm:$0xf]
    %v779 = vld [vmem:[#allocation5 + $0x1b4] sm:$0xf]
    %v780 = vld [vmem:[#allocation5 + $0x1b8] sm:$0xf]
    %v781 = vld [vmem:[#allocation5 + $0x1bc] sm:$0xf]
    %v782 = vld [vmem:[#allocation5 + $0x1c0] sm:$0xf]
    %v783 = vld [vmem:[#allocation5 + $0x1c4] sm:$0xf]
    %v784 = vld [vmem:[#allocation5 + $0x1c8] sm:$0xf]
    %v785 = vld [vmem:[#allocation5 + $0x1cc] sm:$0xf]
    %v786 = vld [vmem:[#allocation5 + $0x1d0] sm:$0xf]
    %v787 = vld [vmem:[#allocation5 + $0x1d4] sm:$0xf]
    %v788 = vld [vmem:[#allocation5 + $0x1d8] sm:$0xf]
    %v789 = vld [vmem:[#allocation5 + $0x1dc] sm:$0xf]
    %v790 = vld [vmem:[#allocation5 + $0x1e0] sm:$0xf]
    %v791 = vld [vmem:[#allocation5 + $0x1e4] sm:$0xf]
    %v792 = vld [vmem:[#allocation5 + $0x1e8] sm:$0xf]
    %v793 = vld [vmem:[#allocation5 + $0x1ec] sm:$0xf]
    %v794 = vld [vmem:[#allocation5 + $0x1f0] sm:$0xf]
    %v795 = vld [vmem:[#allocation5 + $0x1f4] sm:$0xf]
    %v796 = vld [vmem:[#allocation5 + $0x1f8] sm:$0xf]
    %v797 = vld [vmem:[#allocation5 + $0x1fc] sm:$0xf]
    %v798 = vld [vmem:[%s5] sm:$0x1]
    %v800 = vlaneseq
    %v801 = vshrl.u32 %v800, 7
    %v802 = vsub.s32 0, %v801
    %v803 = vrot.slane %v798, %v802
    %v933 = vunpack.c.l.b16 %v670
    %v934 = vunpack.c.l.b16 %v671
    %v935 = vunpack.c.l.b16 %v672
    %v936 = vunpack.c.l.b16 %v673
    %v937 = vunpack.c.l.b16 %v674
    %v938 = vunpack.c.l.b16 %v675
    %v939 = vunpack.c.l.b16 %v676
    %v940 = vunpack.c.l.b16 %v677
    %v941 = vunpack.c.l.b16 %v678
    %v942 = vunpack.c.l.b16 %v679
    %v943 = vunpack.c.l.b16 %v680
    %v944 = vunpack.c.l.b16 %v681
    %v945 = vunpack.c.l.b16 %v682
    %v946 = vunpack.c.l.b16 %v683
    %v947 = vunpack.c.l.b16 %v684
    %v948 = vunpack.c.l.b16 %v685
    %v949 = vunpack.c.l.b16 %v686
    %v950 = vunpack.c.l.b16 %v687
    %v951 = vunpack.c.l.b16 %v688
    %v952 = vunpack.c.l.b16 %v689
    %v953 = vunpack.c.l.b16 %v690
    %v954 = vunpack.c.l.b16 %v691
    %v955 = vunpack.c.l.b16 %v692
    %v956 = vunpack.c.l.b16 %v693
    %v957 = vunpack.c.l.b16 %v694
    %v958 = vunpack.c.l.b16 %v695
    %v959 = vunpack.c.l.b16 %v696
    %v960 = vunpack.c.l.b16 %v697
    %v961 = vunpack.c.l.b16 %v698
    %v962 = vunpack.c.l.b16 %v699
    %v963 = vunpack.c.l.b16 %v700
    %v964 = vunpack.c.l.b16 %v701
    %v965 = vunpack.c.l.b16 %v702
    %v966 = vunpack.c.l.b16 %v703
    %v967 = vunpack.c.l.b16 %v704
    %v968 = vunpack.c.l.b16 %v705
    %v969 = vunpack.c.l.b16 %v706
    %v970 = vunpack.c.l.b16 %v707
    %v971 = vunpack.c.l.b16 %v708
    %v972 = vunpack.c.l.b16 %v709
    %v973 = vunpack.c.l.b16 %v710
    %v974 = vunpack.c.l.b16 %v711
    %v975 = vunpack.c.l.b16 %v712
    %v976 = vunpack.c.l.b16 %v713
    %v977 = vunpack.c.l.b16 %v714
    %v978 = vunpack.c.l.b16 %v715
    %v979 = vunpack.c.l.b16 %v716
    %v980 = vunpack.c.l.b16 %v717
    %v981 = vunpack.c.l.b16 %v718
    %v982 = vunpack.c.l.b16 %v719
    %v983 = vunpack.c.l.b16 %v720
    %v984 = vunpack.c.l.b16 %v721
    %v985 = vunpack.c.l.b16 %v722
    %v986 = vunpack.c.l.b16 %v723
    %v987 = vunpack.c.l.b16 %v724
    %v988 = vunpack.c.l.b16 %v725
    %v989 = vunpack.c.l.b16 %v726
    %v990 = vunpack.c.l.b16 %v727
    %v991 = vunpack.c.l.b16 %v728
    %v992 = vunpack.c.l.b16 %v729
    %v993 = vunpack.c.l.b16 %v730
    %v994 = vunpack.c.l.b16 %v731
    %v995 = vunpack.c.l.b16 %v732
    %v996 = vunpack.c.l.b16 %v733
    %v997 = vunpack.c.l.b16 %v734
    %v998 = vunpack.c.l.b16 %v735
    %v999 = vunpack.c.l.b16 %v736
    %v1000 = vunpack.c.l.b16 %v737
    %v1001 = vunpack.c.l.b16 %v738
    %v1002 = vunpack.c.l.b16 %v739
    %v1003 = vunpack.c.l.b16 %v740
    %v1004 = vunpack.c.l.b16 %v741
    %v1005 = vunpack.c.l.b16 %v742
    %v1006 = vunpack.c.l.b16 %v743
    %v1007 = vunpack.c.l.b16 %v744
    %v1008 = vunpack.c.l.b16 %v745
    %v1009 = vunpack.c.l.b16 %v746
    %v1010 = vunpack.c.l.b16 %v747
    %v1011 = vunpack.c.l.b16 %v748
    %v1012 = vunpack.c.l.b16 %v749
    %v1013 = vunpack.c.l.b16 %v750
    %v1014 = vunpack.c.l.b16 %v751
    %v1015 = vunpack.c.l.b16 %v752
    %v1016 = vunpack.c.l.b16 %v753
    %v1017 = vunpack.c.l.b16 %v754
    %v1018 = vunpack.c.l.b16 %v755
    %v1019 = vunpack.c.l.b16 %v756
    %v1020 = vunpack.c.l.b16 %v757
    %v1021 = vunpack.c.l.b16 %v758
    %v1022 = vunpack.c.l.b16 %v759
    %v1023 = vunpack.c.l.b16 %v760
    %v1024 = vunpack.c.l.b16 %v761
    %v1025 = vunpack.c.l.b16 %v762
    %v1026 = vunpack.c.l.b16 %v763
    %v1027 = vunpack.c.l.b16 %v764
    %v1028 = vunpack.c.l.b16 %v765
    %v1029 = vunpack.c.l.b16 %v766
    %v1030 = vunpack.c.l.b16 %v767
    %v1031 = vunpack.c.l.b16 %v768
    %v1032 = vunpack.c.l.b16 %v769
    %v1033 = vunpack.c.l.b16 %v770
    %v1034 = vunpack.c.l.b16 %v771
    %v1035 = vunpack.c.l.b16 %v772
    %v1036 = vunpack.c.l.b16 %v773
    %v1037 = vunpack.c.l.b16 %v774
    %v1038 = vunpack.c.l.b16 %v775
    %v1039 = vunpack.c.l.b16 %v776
    %v1040 = vunpack.c.l.b16 %v777
    %v1041 = vunpack.c.l.b16 %v778
    %v1042 = vunpack.c.l.b16 %v779
    %v1043 = vunpack.c.l.b16 %v780
    %v1044 = vunpack.c.l.b16 %v781
    %v1045 = vunpack.c.l.b16 %v782
    %v1046 = vunpack.c.l.b16 %v783
    %v1047 = vunpack.c.l.b16 %v784
    %v1048 = vunpack.c.l.b16 %v785
    %v1049 = vunpack.c.l.b16 %v786
    %v1050 = vunpack.c.l.b16 %v787
    %v1051 = vunpack.c.l.b16 %v788
    %v1052 = vunpack.c.l.b16 %v789
    %v1053 = vunpack.c.l.b16 %v790
    %v1054 = vunpack.c.l.b16 %v791
    %v1055 = vunpack.c.l.b16 %v792
    %v1056 = vunpack.c.l.b16 %v793
    %v1057 = vunpack.c.l.b16 %v794
    %v1058 = vunpack.c.l.b16 %v795
    %v1059 = vunpack.c.l.b16 %v796
    %v1060 = vunpack.c.l.b16 %v797
    %v1061 = vpack.c.b16 %v934, %v933
    %v1062 = vpack.c.b16 %v936, %v935
    %v1063 = vpack.c.b16 %v938, %v937
    %v1064 = vpack.c.b16 %v940, %v939
    %v1065 = vpack.c.b16 %v942, %v941
    %v1066 = vpack.c.b16 %v944, %v943
    %v1067 = vpack.c.b16 %v946, %v945
    %v1068 = vpack.c.b16 %v948, %v947
    %v1069 = vpack.c.b16 %v950, %v949
    %v1070 = vpack.c.b16 %v952, %v951
    %v1071 = vpack.c.b16 %v954, %v953
    %v1072 = vpack.c.b16 %v956, %v955
    %v1073 = vpack.c.b16 %v958, %v957
    %v1074 = vpack.c.b16 %v960, %v959
    %v1075 = vpack.c.b16 %v962, %v961
    %v1076 = vpack.c.b16 %v964, %v963
    %v1077 = vpack.c.b16 %v966, %v965
    %v1078 = vpack.c.b16 %v968, %v967
    %v1079 = vpack.c.b16 %v970, %v969
    %v1080 = vpack.c.b16 %v972, %v971
    %v1081 = vpack.c.b16 %v974, %v973
    %v1082 = vpack.c.b16 %v976, %v975
    %v1083 = vpack.c.b16 %v978, %v977
    %v1084 = vpack.c.b16 %v980, %v979
    %v1085 = vpack.c.b16 %v982, %v981
    %v1086 = vpack.c.b16 %v984, %v983
    %v1087 = vpack.c.b16 %v986, %v985
    %v1088 = vpack.c.b16 %v988, %v987
    %v1089 = vpack.c.b16 %v990, %v989
    %v1090 = vpack.c.b16 %v992, %v991
    %v1091 = vpack.c.b16 %v994, %v993
    %v1092 = vpack.c.b16 %v996, %v995
    %v1093 = vpack.c.b16 %v998, %v997
    %v1094 = vpack.c.b16 %v1000, %v999
    %v1095 = vpack.c.b16 %v1002, %v1001
    %v1096 = vpack.c.b16 %v1004, %v1003
    %v1097 = vpack.c.b16 %v1006, %v1005
    %v1098 = vpack.c.b16 %v1008, %v1007
    %v1099 = vpack.c.b16 %v1010, %v1009
    %v1100 = vpack.c.b16 %v1012, %v1011
    %v1101 = vpack.c.b16 %v1014, %v1013
    %v1102 = vpack.c.b16 %v1016, %v1015
    %v1103 = vpack.c.b16 %v1018, %v1017
    %v1104 = vpack.c.b16 %v1020, %v1019
    %v1105 = vpack.c.b16 %v1022, %v1021
    %v1106 = vpack.c.b16 %v1024, %v1023
    %v1107 = vpack.c.b16 %v1026, %v1025
    %v1108 = vpack.c.b16 %v1028, %v1027
    %v1109 = vpack.c.b16 %v1030, %v1029
    %v1110 = vpack.c.b16 %v1032, %v1031
    %v1111 = vpack.c.b16 %v1034, %v1033
    %v1112 = vpack.c.b16 %v1036, %v1035
    %v1113 = vpack.c.b16 %v1038, %v1037
    %v1114 = vpack.c.b16 %v1040, %v1039
    %v1115 = vpack.c.b16 %v1042, %v1041
    %v1116 = vpack.c.b16 %v1044, %v1043
    %v1117 = vpack.c.b16 %v1046, %v1045
    %v1118 = vpack.c.b16 %v1048, %v1047
    %v1119 = vpack.c.b16 %v1050, %v1049
    %v1120 = vpack.c.b16 %v1052, %v1051
    %v1121 = vpack.c.b16 %v1054, %v1053
    %v1122 = vpack.c.b16 %v1056, %v1055
    %v1123 = vpack.c.b16 %v1058, %v1057
    %v1124 = vpack.c.b16 %v1060, %v1059
    %1189 = vmatprep.subr.bf16.mxu0 0
    %1190 = vmatpush1.bf16.msra.mxu0 %v1068
    %1191 = vmatprep.subr.bf16.mxu0 0
    %1192 = vmatpush1.bf16.msra.mxu0 %v1067
    %1193 = vmatprep.subr.bf16.mxu0 0
    %1194 = vmatpush1.bf16.msra.mxu0 %v1066
    %1195 = vmatprep.subr.bf16.mxu0 0
    %1196 = vmatpush1.bf16.msra.mxu0 %v1065
    %1197 = vmatprep.subr.bf16.mxu0 0
    %1198 = vmatpush1.bf16.msra.mxu0 %v1064
    %1199 = vmatprep.subr.bf16.mxu0 0
    %1200 = vmatpush1.bf16.msra.mxu0 %v1063
    %1201 = vmatprep.subr.bf16.mxu0 0
    %1202 = vmatpush1.bf16.msra.mxu0 %v1062
    %1203 = vmatprep.subr.bf16.mxu0 0
    %1204 = vmatpush1.bf16.msra.mxu0 %v1061
    %1205 = vmatprep.subr.bf16.mxu0 0
    %1206 = vmatpush2.bf16.msra.mxu0 %v1076
    %1207 = vmatprep.subr.bf16.mxu0 0
    %1208 = vmatpush2.bf16.msra.mxu0 %v1075
    %1209 = vmatprep.subr.bf16.mxu0 0
    %1210 = vmatpush2.bf16.msra.mxu0 %v1074
    %1211 = vmatprep.subr.bf16.mxu0 0
    %1212 = vmatpush2.bf16.msra.mxu0 %v1073
    %1213 = vmatprep.subr.bf16.mxu0 0
    %1214 = vmatpush2.bf16.msra.mxu0 %v1072
    %1215 = vmatprep.subr.bf16.mxu0 0
    %1216 = vmatpush2.bf16.msra.mxu0 %v1071
    %1217 = vmatprep.subr.bf16.mxu0 0
    %1218 = vmatpush2.bf16.msra.mxu0 %v1070
    %1219 = vmatprep.subr.bf16.mxu0 0
    %1220 = vmatpush2.bf16.msra.mxu0 %v1069
    %1221 = vmatprep.mubr.bf16.mxu0 %v663
    %1222 = vmatmul.mubr.bf16.gmra.mxu0 %v662
    %v1223 = vpop.f32.mrf.mxu0
    %v1224 = vadd.f32 %v803, %v1223
    %v1225 = vpop.f32.mrf.mxu0
    %v1226 = vpop.f32.mrf.mxu0
    %v1227 = vpop.f32.mrf.mxu0
    %1228 = vdwg.mxu0
    %1229 = vmatprep.subr.bf16.mxu0 0
    %1230 = vmatpush1.bf16.msra.mxu0 %v1084
    %1231 = vmatprep.subr.bf16.mxu0 0
    %1232 = vmatpush1.bf16.msra.mxu0 %v1083
    %1233 = vmatprep.subr.bf16.mxu0 0
    %1234 = vmatpush1.bf16.msra.mxu0 %v1082
    %1235 = vmatprep.subr.bf16.mxu0 0
    %1236 = vmatpush1.bf16.msra.mxu0 %v1081
    %1237 = vmatprep.subr.bf16.mxu0 0
    %1238 = vmatpush1.bf16.msra.mxu0 %v1080
    %1239 = vmatprep.subr.bf16.mxu0 0
    %1240 = vmatpush1.bf16.msra.mxu0 %v1079
    %1241 = vmatprep.subr.bf16.mxu0 0
    %1242 = vmatpush1.bf16.msra.mxu0 %v1078
    %1243 = vmatprep.subr.bf16.mxu0 0
    %1244 = vmatpush1.bf16.msra.mxu0 %v1077
    %1245 = vmatprep.subr.bf16.mxu0 0
    %1246 = vmatpush2.bf16.msra.mxu0 %v1092
    %1247 = vmatprep.subr.bf16.mxu0 0
    %1248 = vmatpush2.bf16.msra.mxu0 %v1091
    %1249 = vmatprep.subr.bf16.mxu0 0
    %1250 = vmatpush2.bf16.msra.mxu0 %v1090
    %1251 = vmatprep.subr.bf16.mxu0 0
    %1252 = vmatpush2.bf16.msra.mxu0 %v1089
    %1253 = vmatprep.subr.bf16.mxu0 0
    %1254 = vmatpush2.bf16.msra.mxu0 %v1088
    %1255 = vmatprep.subr.bf16.mxu0 0
    %1256 = vmatpush2.bf16.msra.mxu0 %v1087
    %1257 = vmatprep.subr.bf16.mxu0 0
    %1258 = vmatpush2.bf16.msra.mxu0 %v1086
    %1259 = vmatprep.subr.bf16.mxu0 0
    %1260 = vmatpush2.bf16.msra.mxu0 %v1085
    %1261 = vmatprep.mubr.bf16.mxu0 %v665
    %1262 = vmatmul.mubr.bf16.gmra.mxu0 %v664
    %v1263 = vpop.f32.mrf.mxu0
    %v1264 = vadd.f32 %v1224, %v1263
    %v1265 = vpop.f32.mrf.mxu0
    %v1266 = vpop.f32.mrf.mxu0
    %v1267 = vpop.f32.mrf.mxu0
    %1268 = vdwg.mxu0
    %1269 = vmatprep.subr.bf16.mxu0 0
    %1270 = vmatpush1.bf16.msra.mxu0 %v1100
    %1271 = vmatprep.subr.bf16.mxu0 0
    %1272 = vmatpush1.bf16.msra.mxu0 %v1099
    %1273 = vmatprep.subr.bf16.mxu0 0
    %1274 = vmatpush1.bf16.msra.mxu0 %v1098
    %1275 = vmatprep.subr.bf16.mxu0 0
    %1276 = vmatpush1.bf16.msra.mxu0 %v1097
    %1277 = vmatprep.subr.bf16.mxu0 0
    %1278 = vmatpush1.bf16.msra.mxu0 %v1096
    %1279 = vmatprep.subr.bf16.mxu0 0
    %1280 = vmatpush1.bf16.msra.mxu0 %v1095
    %1281 = vmatprep.subr.bf16.mxu0 0
    %1282 = vmatpush1.bf16.msra.mxu0 %v1094
    %1283 = vmatprep.subr.bf16.mxu0 0
    %1284 = vmatpush1.bf16.msra.mxu0 %v1093
    %1285 = vmatprep.subr.bf16.mxu0 0
    %1286 = vmatpush2.bf16.msra.mxu0 %v1108
    %1287 = vmatprep.subr.bf16.mxu0 0
    %1288 = vmatpush2.bf16.msra.mxu0 %v1107
    %1289 = vmatprep.subr.bf16.mxu0 0
    %1290 = vmatpush2.bf16.msra.mxu0 %v1106
    %1291 = vmatprep.subr.bf16.mxu0 0
    %1292 = vmatpush2.bf16.msra.mxu0 %v1105
    %1293 = vmatprep.subr.bf16.mxu0 0
    %1294 = vmatpush2.bf16.msra.mxu0 %v1104
    %1295 = vmatprep.subr.bf16.mxu0 0
    %1296 = vmatpush2.bf16.msra.mxu0 %v1103
    %1297 = vmatprep.subr.bf16.mxu0 0
    %1298 = vmatpush2.bf16.msra.mxu0 %v1102
    %1299 = vmatprep.subr.bf16.mxu0 0
    %1300 = vmatpush2.bf16.msra.mxu0 %v1101
    %1301 = vmatprep.mubr.bf16.mxu0 %v667
    %1302 = vmatmul.mubr.bf16.gmra.mxu0 %v666
    %v1303 = vpop.f32.mrf.mxu0
    %v1304 = vadd.f32 %v1264, %v1303
    %v1305 = vpop.f32.mrf.mxu0
    %v1306 = vpop.f32.mrf.mxu0
    %v1307 = vpop.f32.mrf.mxu0
    %1308 = vdwg.mxu0
    %1309 = vmatprep.subr.bf16.mxu0 0
    %1310 = vmatpush1.bf16.msra.mxu0 %v1116
    %1311 = vmatprep.subr.bf16.mxu0 0
    %1312 = vmatpush1.bf16.msra.mxu0 %v1115
    %1313 = vmatprep.subr.bf16.mxu0 0
    %1314 = vmatpush1.bf16.msra.mxu0 %v1114
    %1315 = vmatprep.subr.bf16.mxu0 0
    %1316 = vmatpush1.bf16.msra.mxu0 %v1113
    %1317 = vmatprep.subr.bf16.mxu0 0
    %1318 = vmatpush1.bf16.msra.mxu0 %v1112
    %1319 = vmatprep.subr.bf16.mxu0 0
    %1320 = vmatpush1.bf16.msra.mxu0 %v1111
    %1321 = vmatprep.subr.bf16.mxu0 0
    %1322 = vmatpush1.bf16.msra.mxu0 %v1110
    %1323 = vmatprep.subr.bf16.mxu0 0
    %1324 = vmatpush1.bf16.msra.mxu0 %v1109
    %1325 = vmatprep.subr.bf16.mxu0 0
    %1326 = vmatpush2.bf16.msra.mxu0 %v1124
    %1327 = vmatprep.subr.bf16.mxu0 0
    %1328 = vmatpush2.bf16.msra.mxu0 %v1123
    %1329 = vmatprep.subr.bf16.mxu0 0
    %1330 = vmatpush2.bf16.msra.mxu0 %v1122
    %1331 = vmatprep.subr.bf16.mxu0 0
    %1332 = vmatpush2.bf16.msra.mxu0 %v1121
    %1333 = vmatprep.subr.bf16.mxu0 0
    %1334 = vmatpush2.bf16.msra.mxu0 %v1120
    %1335 = vmatprep.subr.bf16.mxu0 0
    %1336 = vmatpush2.bf16.msra.mxu0 %v1119
    %1337 = vmatprep.subr.bf16.mxu0 0
    %1338 = vmatpush2.bf16.msra.mxu0 %v1118
    %1339 = vmatprep.subr.bf16.mxu0 0
    %1340 = vmatpush2.bf16.msra.mxu0 %v1117
    %1341 = vmatprep.mubr.bf16.mxu0 %v669
    %1342 = vmatmul.mubr.bf16.gmra.mxu0 %v668
    %v1343 = vpop.f32.mrf.mxu0
    %v1344 = vadd.f32 %v1304, %v1343
    %v1345 = vpop.f32.mrf.mxu0
    %v1346 = vpop.f32.mrf.mxu0
    %v1347 = vpop.f32.mrf.mxu0
    %1348 = vdwg.mxu0
    %v1349 = vpack.c.bf16 %v1344, %v1344
    %1350 = vst [vmem:[#allocation7] sm:$0xf] %v1349
    // Predicated region
    $region34: #{tpu_custom_call.1} parent=1 // pred_check
      _
    $region35: #{tpu_custom_call.1} parent=1 // pred_check_branch
      %1352 = sbr.rel (0) target = $region37
    $region36: #{tpu_custom_call.1} parent=1 // pred_region
      %s1354 = ssub.s32 64, 64
      %1355 = vsyncadd [#allocation4], %s1354
      %s1357 = sshll.u32 [#allocation7], 4
      %s1358 = int_to_ptr.vmem [resolvable:$true] %s1357
      %1360 = dma.vmem_to_hbm [thread:$0]  %s1358, 64, %s6, [#allocation4]
    $region37: #{tpu_custom_call.1} parent=1 // pred_fallthru
      _
    // Predicated region
    $region38: #{tpu_custom_call.1} parent=1 // pred_check
      _
    $region39: #{tpu_custom_call.1} parent=1 // pred_check_branch
      %1362 = sbr.rel (0) target = $region41
    $region40: #{tpu_custom_call.1} parent=1 // pred_region
      %1363 = dma.done [#allocation4], 64
    $region41: #{tpu_custom_call.1} parent=1 // pred_fallthru
      _
    %1364 = vsyncpa [#allocation3], 1
    %1365 = vsyncpa [#allocation6], 1
    %1366 = vsyncpa [#allocation4], 1

</llo_original>
